<compile_context>
chip_gen: v7x
topology: tpu7x:2x2x1
jax: 0.10.0
libtpu: 0.0.40
codegen_flags: <defaults>
</compile_context>

<pallas_src>
import functools

import jax
import jax.numpy as jnp
from jax.experimental import pallas as pl
from jax.experimental.pallas import tpu as pltpu


def _round_up(x, m):
    return ((x + m - 1) // m) * m


def _vmem_capacity_bytes():
    """Physical VMEM per TensorCore (128 MiB v5e/v6e, 64 MiB v7x); safe fallback."""
    try:
        cap = int(pltpu.get_tpu_info().vmem_capacity_bytes)
        if cap > 0:
            return cap
    except Exception:
        pass
    return 64 * 1024 * 1024  # conservative (v7x per-TC)


def _apply_activation(y, activation):
    if activation is None:
        return y
    if activation == "relu":
        return jnp.maximum(y, 0.0)
    if activation == "gelu":
        return jax.nn.gelu(y)
    if activation == "tanh":
        return jnp.tanh(y)
    raise ValueError(f"unsupported activation: {activation}")


def _choose_tile(dim, align, max_tile, min_tile=128):
    """Tile (multiple of `align`, <= max_tile) minimizing padding of `dim`."""
    d = _round_up(dim, align)
    if d <= max_tile:
        return d
    lo = min(_round_up(min_tile, align), max_tile)
    best_t, best_pad = lo, None
    t = lo
    while t <= max_tile:
        pad = _round_up(d, t) - d
        if best_pad is None or pad < best_pad or (pad == best_pad and t > best_t):
            best_t, best_pad = t, pad
        t += align
    return best_t


def _pick_row_tile(M, max_tile=512):
    """Row tile: MXU-sized, >=2 grid tiles when possible (v7x megacore),
    divisor-aware so awkward M doesn't waste 25-35% of rows in padding."""
    m8 = _round_up(M, 8)
    if m8 <= max_tile:
        half = m8 // 2
        if m8 >= 256 and half % 8 == 0:
            return half                       # two row tiles -> both v7x cores busy
        return m8
    m128 = _round_up(M, 128)
    for t in range(max_tile, 127, -8):         # largest divisor of round_up(M,128)
        if m128 % t == 0:
            return t
    return _choose_tile(M, 8, max_tile)


def _largest_k_tile(k_pad, max_tile=1024):
    if k_pad <= 2048:
        return k_pad                           # full K resident: no accumulator traffic
    for t in range(max_tile, 127, -128):
        if k_pad % t == 0:
            return t
    return 128


# ---------------------------------------------------------------------------
# Path 1: whole MLP fused in a single pallas_call (grid over row tiles only).
# ---------------------------------------------------------------------------
def _fused_mlp_kernel(*refs, n_layers, activation, mxu_dtype):
    # refs = (x_ref, w0, b0, w1, b1, ..., w_{L-1}, b_{L-1}, o_ref)
    x_ref = refs[0]
    o_ref = refs[-1]
    param_refs = refs[1:-1]

    op_dtype = mxu_dtype if mxu_dtype is not None else x_ref.dtype
    h = x_ref[...].astype(op_dtype)
    for li in range(n_layers):
        w = param_refs[2 * li][...].astype(op_dtype)
        b = param_refs[2 * li + 1][...]
        acc = jnp.dot(h, w, preferred_element_type=jnp.float32)
        acc = acc + b.astype(jnp.float32)           # bias + epilogue in f32
        if li < n_layers - 1:
            acc = _apply_activation(acc, activation)
            h = acc.astype(op_dtype)                # feed MXU in operand dtype
        else:
            h = acc
    o_ref[...] = h.astype(o_ref.dtype)


def _fused_footprint_bytes(tm, k0, params, n_out_pad, in_itemsize,
                           single_buffer_weights=True):
    # double-buffered row tiles (x in, out)
    total = 2 * tm * k0 * in_itemsize
    total += 2 * tm * n_out_pad * in_itemsize
    # resident weights/biases: counted once when single-buffered (Buffered(1))
    wb_mult = 1 if single_buffer_weights else 2
    widths = [k0]
    for w_t, b in params:
        w_bytes = jnp.dtype(w_t.dtype).itemsize
        total += wb_mult * (w_t.size + b.size) * w_bytes
        widths.append(w_t.shape[1])
    # running activation + f32 accumulator are always f32 in-kernel
    max_w = max(max(widths), n_out_pad)
    total += 2 * tm * max_w * 4
    return total


def fused_mlp_pallas(x2d, params, activation, *, mxu_dtype=None,
                     vmem_limit_bytes=None):
    """x2d: (M, K0); params: list of (W_t (in,out), b (out,)). Returns (M, N)."""
    M, K0 = x2d.shape
    n_layers = len(params)
    N_out = params[-1][0].shape[1]
    n_out_pad = _round_up(N_out, 128)               # lane-dense output stores

    tm = _pick_row_tile(M)
    m_pad = _round_up(M, tm)
    x_p = jnp.pad(x2d, ((0, m_pad - M), (0, 0))) if m_pad != M else x2d

    flat_params = []
    wb_shapes = []
    for li, (w_t, b) in enumerate(params):
        k, n = w_t.shape
        if li == n_layers - 1 and n != n_out_pad:
            w_t = jnp.pad(w_t, ((0, 0), (0, n_out_pad - n)))
            b = jnp.pad(b, (0, n_out_pad - n))
            n = n_out_pad
        flat_params.append(w_t)
        flat_params.append(b.reshape(1, n))
        wb_shapes.append((k, n))

    if vmem_limit_bytes is None:
        vmem_limit_bytes = int(_vmem_capacity_bytes() * 0.75)

    kernel = functools.partial(_fused_mlp_kernel, n_layers=n_layers,
                               activation=activation, mxu_dtype=mxu_dtype)

    def build(single_buffer_weights):
        wb_kwargs = ({"pipeline_mode": pl.Buffered(1)}
                     if single_buffer_weights else {})
        in_specs = [pl.BlockSpec((tm, K0), lambda i: (i, 0))]
        for (k, n) in wb_shapes:
            # constant index_map -> fetched once; single-buffer to halve VMEM
            in_specs.append(pl.BlockSpec((k, n), lambda i: (0, 0), **wb_kwargs))
            in_specs.append(pl.BlockSpec((1, n), lambda i: (0, 0), **wb_kwargs))
        return pl.pallas_call(
            kernel,
            out_shape=jax.ShapeDtypeStruct((m_pad, n_out_pad), x2d.dtype),
            grid_spec=pltpu.PrefetchScalarGridSpec(
                num_scalar_prefetch=0,
                grid=(m_pad // tm,),
                in_specs=in_specs,
                out_specs=pl.BlockSpec((tm, n_out_pad), lambda i: (i, 0)),
            ),
            compiler_params=pltpu.CompilerParams(
                dimension_semantics=("parallel",),    # rows independent -> megacore
                vmem_limit_bytes=vmem_limit_bytes,
            ),
        )

    try:
        out = build(True)(x_p, *flat_params)
    except Exception:
        # Fallback if single-buffered (Buffered(1)) resident specs are rejected.
        out = build(False)(x_p, *flat_params)
    return out[:M, :N_out]


# ---------------------------------------------------------------------------
# Path 2: per-layer linear on padded activations, (M, N[, K]) tiling.
# ---------------------------------------------------------------------------
def _linear_single_k_kernel(x_ref, w_ref, b_ref, o_ref, *, activation, mxu_dtype):
    # Full K resident in one step: no f32 accumulator scratch traffic at all.
    op_dtype = mxu_dtype if mxu_dtype is not None else x_ref.dtype
    y = jnp.dot(x_ref[...].astype(op_dtype), w_ref[...].astype(op_dtype),
                preferred_element_type=jnp.float32)
    y = y + b_ref[...].astype(jnp.float32)
    y = _apply_activation(y, activation)
    o_ref[...] = y.astype(o_ref.dtype)


def _linear_multi_k_kernel(x_ref, w_ref, b_ref, o_ref, acc_ref, *,
                           activation, mxu_dtype):
    k = pl.program_id(2)

    @pl.when(k == 0)
    def _():
        acc_ref[...] = jnp.zeros_like(acc_ref)

    op_dtype = mxu_dtype if mxu_dtype is not None else x_ref.dtype
    acc_ref[...] += jnp.dot(x_ref[...].astype(op_dtype),
                            w_ref[...].astype(op_dtype),
                            preferred_element_type=jnp.float32)

    @pl.when(k == pl.num_programs(2) - 1)
    def _():
        y = acc_ref[...] + b_ref[...].astype(jnp.float32)  # bias once, in epilogue
        y = _apply_activation(y, activation)
        o_ref[...] = y.astype(o_ref.dtype)


def linear_pallas_padded(x_p, w_t, b, activation=None, *, tm=None,
                         mxu_dtype=None, vmem_limit_bytes=None):
    """One Linear(+activation) layer on an already padded activation.

    x_p: (m_pad, k_pad) with k_pad a multiple of 128 (padded cols are zero).
    w_t: (K, N) with K <= k_pad (zero rows appended); b: (N,).
    Returns the PADDED output (m_pad, n_pad): the caller carries padded
    activations across layers (padded output columns stay exactly zero since
    the padded bias is zero and act(0) == 0 for relu/gelu/tanh) and slices
    once at the very end -- no per-layer HBM slice/re-pad round trip.
    """
    m_pad, k_pad = x_p.shape
    K, N = w_t.shape

    tn = _choose_tile(N, 128, 512)
    n_pad = _round_up(N, tn)
    if (k_pad - K) or (n_pad - N):
        w_t = jnp.pad(w_t, ((0, k_pad - K), (0, n_pad - N)))
    if n_pad - N:
        b = jnp.pad(b, (0, n_pad - N))

    if tm is None:
        tm = next(t for t in range(min(512, m_pad), 7, -8) if m_pad % t == 0)
    tk = _largest_k_tile(k_pad)
    n_k = k_pad // tk

    if vmem_limit_bytes is None:
        vmem_limit_bytes = int(_vmem_capacity_bytes() * 0.75)

    if n_k == 1:
        kernel = functools.partial(_linear_single_k_kernel,
                                   activation=activation, mxu_dtype=mxu_dtype)
        grid = (m_pad // tm, n_pad // tn)
        in_specs = [pl.BlockSpec((tm, k_pad), lambda i, j: (i, 0)),
                    pl.BlockSpec((k_pad, tn), lambda i, j: (0, j)),
                    pl.BlockSpec((1, tn), lambda i, j: (0, j))]
        out_specs = pl.BlockSpec((tm, tn), lambda i, j: (i, j))
        scratch = []
        semantics = ("parallel", "parallel")
    else:
        kernel = functools.partial(_linear_multi_k_kernel,
                                   activation=activation, mxu_dtype=mxu_dtype)
        grid = (m_pad // tm, n_pad // tn, n_k)
        in_specs = [pl.BlockSpec((tm, tk), lambda i, j, k: (i, k)),
                    pl.BlockSpec((tk, tn), lambda i, j, k: (k, j)),
                    pl.BlockSpec((1, tn), lambda i, j, k: (0, j))]
        out_specs = pl.BlockSpec((tm, tn), lambda i, j, k: (i, j))
        scratch = [pltpu.VMEM((tm, tn), jnp.float32)]
        semantics = ("parallel", "parallel", "arbitrary")

    return pl.pallas_call(
        kernel,
        out_shape=jax.ShapeDtypeStruct((m_pad, n_pad), x_p.dtype),
        grid_spec=pltpu.PrefetchScalarGridSpec(
            num_scalar_prefetch=0,
            grid=grid,
            in_specs=in_specs,
            out_specs=out_specs,
            scratch_shapes=scratch,
        ),
        compiler_params=pltpu.CompilerParams(
            dimension_semantics=semantics,
            vmem_limit_bytes=vmem_limit_bytes,
        ),
    )(x_p, w_t, b.reshape(1, n_pad))


# ---------------------------------------------------------------------------
# Module wrapper (matches QuAC Multi_linear_layer forward semantics).
# ---------------------------------------------------------------------------
class MultiLinearLayerPallas:
    """JAX/Pallas port of QuAC Multi_linear_layer.

    Set mxu_dtype=jnp.bfloat16 to run the MXU with bf16 operands (f32
    accumulation) on v6e/v7x for ~2-4x matmul throughput when compute-bound;
    default keeps f32 operands for bit-tight comparison with the reference.
    """

    def __init__(self, n_layers, input_size, hidden_size, output_size,
                 activation="relu", key=None, dtype=jnp.float32,
                 mxu_dtype=None):
        assert n_layers >= 2
        if key is None:
            key = jax.random.PRNGKey(42)
        self.activation = activation
        self.mxu_dtype = mxu_dtype
        dims = [input_size] + [hidden_size] * (n_layers - 1) + [output_size]
        self.params = []  # list of (W_t (in,out), b (out,))
        for li in range(n_layers):
            fan_in, fan_out = dims[li], dims[li + 1]
            key, kw, kb = jax.random.split(key, 3)
            bound = 1.0 / (fan_in ** 0.5)  # mimic torch.nn.Linear default init
            w = jax.random.uniform(kw, (fan_out, fan_in), dtype, -bound, bound)
            b = jax.random.uniform(kb, (fan_out,), dtype, -bound, bound)
            self.params.append((w.T, b))  # store transposed: (in, out)

    def __call__(self, x, *, force_tiled=False):
        lead = x.shape[:-1]
        h = x.reshape(-1, x.shape[-1])
        M, K0 = h.shape
        n_out = self.params[-1][0].shape[1]

        vmem_cap = _vmem_capacity_bytes()
        vmem_limit = int(vmem_cap * 0.75)      # ~96 MiB on v5e/v6e, ~48 MiB on v7x
        fused_budget = int(vmem_cap * 0.65)    # headroom for compiler internals

        use_fused = not force_tiled
        if use_fused:
            tm = _pick_row_tile(M)
            fp = _fused_footprint_bytes(
                tm, K0, self.params, _round_up(n_out, 128),
                in_itemsize=h.dtype.itemsize, single_buffer_weights=True)
            use_fused = fp <= fused_budget

        if use_fused:
            h = fused_mlp_pallas(h, self.params, self.activation,
                                 mxu_dtype=self.mxu_dtype,
                                 vmem_limit_bytes=vmem_limit)
        else:
            # Tiled path: pad rows / K once, carry padded activations between
            # layers, slice exactly once at the end.
            tm = _pick_row_tile(M)
            m_pad = _round_up(M, tm)
            k0_pad = _round_up(K0, 128)
            if m_pad != M or k0_pad != K0:
                h = jnp.pad(h, ((0, m_pad - M), (0, k0_pad - K0)))
            for w_t, b in self.params[:-1]:
                h = linear_pallas_padded(h, w_t, b, activation=self.activation,
                                         tm=tm, mxu_dtype=self.mxu_dtype,
                                         vmem_limit_bytes=vmem_limit)
            w_t, b = self.params[-1]
            h = linear_pallas_padded(h, w_t, b, activation=None, tm=tm,
                                     mxu_dtype=self.mxu_dtype,
                                     vmem_limit_bytes=vmem_limit)
            h = h[:M, :n_out]
        return h.reshape(*lead, h.shape[-1])

    def reference(self, x):
        """Pure-JAX reference for validation."""
        h = x
        for w_t, b in self.params[:-1]:
            h = _apply_activation(jnp.dot(h, w_t) + b, self.activation)
        w_t, b = self.params[-1]
        return jnp.dot(h, w_t) + b


if __name__ == "__main__":
    # --- Test 1: tiny BERT-head shapes -> fused single-kernel path.
    batch, seq, input_size = 2, 8, 32
    hidden_size, output_size, n_layers = 2 * 16, 4, 3

    x = jax.random.normal(jax.random.PRNGKey(0), (batch, seq, input_size),
                          jnp.float32)
    model = MultiLinearLayerPallas(
        n_layers=n_layers, input_size=input_size, hidden_size=hidden_size,
        output_size=output_size, activation="relu")
    out = jax.block_until_ready(model(x))
    ref = model.reference(x)
    assert out.shape == (batch, seq, output_size), out.shape
    assert jnp.allclose(out, ref, atol=1e-4, rtol=1e-4), "fused path mismatch"

    # --- Test 2: fused path with >=2 row tiles (exercises megacore sharding).
    b3, s3, in3, hid3, out3 = 4, 128, 256, 256, 64
    x3 = jax.random.normal(jax.random.PRNGKey(2), (b3, s3, in3), jnp.float32)
    model3 = MultiLinearLayerPallas(
        n_layers=3, input_size=in3, hidden_size=hid3, output_size=out3,
        activation="gelu", key=jax.random.PRNGKey(3))
    out3_v = jax.block_until_ready(model3(x3))
    ref3 = model3.reference(x3)
    assert out3_v.shape == (b3, s3, out3), out3_v.shape
    assert jnp.allclose(out3_v, ref3, atol=2e-3, rtol=2e-3), "fused multi-tile mismatch"

    # --- Test 3: force the tiled path with non-multiple-of-tile dims.
    b2, s2, in2, hid2, out2 = 2, 192, 160, 384, 96
    x2 = jax.random.normal(jax.random.PRNGKey(1), (b2, s2, in2), jnp.float32)
    model2 = MultiLinearLayerPallas(
        n_layers=3, input_size=in2, hidden_size=hid2, output_size=out2,
        activation="relu", key=jax.random.PRNGKey(7))
    out_t = jax.block_until_ready(model2(x2, force_tiled=True))
    ref_t = model2.reference(x2)
    assert out_t.shape == (b2, s2, out2), out_t.shape
    assert jnp.allclose(out_t, ref_t, atol=2e-3, rtol=2e-3), "tiled path mismatch"

    print("KERNEL_OK")
</pallas_src>

<mosaic_0001>
module attributes {stable_mosaic.version = 11 : i64} {
  func.func @_fused_mlp_kernel(%arg0: i32, %arg1: memref<16x32xf32, #tpu.memory_space<vmem>>, %arg2: memref<32x32xf32, #tpu.memory_space<vmem>>, %arg3: memref<1x32xf32, #tpu.memory_space<vmem>>, %arg4: memref<32x32xf32, #tpu.memory_space<vmem>>, %arg5: memref<1x32xf32, #tpu.memory_space<vmem>>, %arg6: memref<32x128xf32, #tpu.memory_space<vmem>>, %arg7: memref<1x128xf32, #tpu.memory_space<vmem>>, %arg8: memref<16x128xf32, #tpu.memory_space<vmem>>) attributes {dimension_semantics = [#tpu.dimension_semantics<parallel>], iteration_bounds = array<i64: 1>, scalar_prefetch = 0 : i64, scratch_operands = 0 : i64, tpu.core_type = #tpu.core_type<tc>, window_params = [{transform_indices = @transform_0, window_bounds = array<i64: 16, 32>}, {pipeline_mode = #tpu.pipeline_mode<synchronous>, transform_indices = @transform_1, window_bounds = array<i64: 32, 32>}, {pipeline_mode = #tpu.pipeline_mode<synchronous>, transform_indices = @transform_2, window_bounds = array<i64: 1, 32>}, {pipeline_mode = #tpu.pipeline_mode<synchronous>, transform_indices = @transform_3, window_bounds = array<i64: 32, 32>}, {pipeline_mode = #tpu.pipeline_mode<synchronous>, transform_indices = @transform_4, window_bounds = array<i64: 1, 32>}, {pipeline_mode = #tpu.pipeline_mode<synchronous>, transform_indices = @transform_5, window_bounds = array<i64: 32, 128>}, {pipeline_mode = #tpu.pipeline_mode<synchronous>, transform_indices = @transform_6, window_bounds = array<i64: 1, 128>}, {transform_indices = @transform_7, window_bounds = array<i64: 16, 128>}]} {
    %c0 = arith.constant 0 : index
    %c0_0 = arith.constant 0 : index
    %0 = vector.load %arg1[%c0, %c0_0] : memref<16x32xf32, #tpu.memory_space<vmem>>, vector<16x32xf32>
    %c0_1 = arith.constant 0 : index
    %c0_2 = arith.constant 0 : index
    %1 = vector.load %arg2[%c0_1, %c0_2] : memref<32x32xf32, #tpu.memory_space<vmem>>, vector<32x32xf32>
    %c0_3 = arith.constant 0 : index
    %c0_4 = arith.constant 0 : index
    %2 = vector.load %arg3[%c0_3, %c0_4] : memref<1x32xf32, #tpu.memory_space<vmem>>, vector<1x32xf32>
    %cst = arith.constant dense<0.000000e+00> : vector<16x32xf32>
    %3 = tpu.matmul %0, %1, %cst {dimension_numbers = #tpu.dot_dimension_numbers<[1], [0], [0], [1], [0, 0, 1, 1], [], []>} : vector<16x32xf32>, vector<32x32xf32>, vector<16x32xf32> -> vector<16x32xf32>
    %4 = vector.broadcast %2 : vector<1x32xf32> to vector<16x32xf32>
    %5 = arith.addf %3, %4 : vector<16x32xf32>
    %cst_5 = arith.constant 0.000000e+00 : f32
    %6 = vector.broadcast %cst_5 : f32 to vector<16x32xf32>
    %7 = arith.maximumf %5, %6 : vector<16x32xf32>
    %c0_6 = arith.constant 0 : index
    %c0_7 = arith.constant 0 : index
    %8 = vector.load %arg4[%c0_6, %c0_7] : memref<32x32xf32, #tpu.memory_space<vmem>>, vector<32x32xf32>
    %c0_8 = arith.constant 0 : index
    %c0_9 = arith.constant 0 : index
    %9 = vector.load %arg5[%c0_8, %c0_9] : memref<1x32xf32, #tpu.memory_space<vmem>>, vector<1x32xf32>
    %cst_10 = arith.constant dense<0.000000e+00> : vector<16x32xf32>
    %10 = tpu.matmul %7, %8, %cst_10 {dimension_numbers = #tpu.dot_dimension_numbers<[1], [0], [0], [1], [0, 0, 1, 1], [], []>} : vector<16x32xf32>, vector<32x32xf32>, vector<16x32xf32> -> vector<16x32xf32>
    %11 = vector.broadcast %9 : vector<1x32xf32> to vector<16x32xf32>
    %12 = arith.addf %10, %11 : vector<16x32xf32>
    %cst_11 = arith.constant 0.000000e+00 : f32
    %13 = vector.broadcast %cst_11 : f32 to vector<16x32xf32>
    %14 = arith.maximumf %12, %13 : vector<16x32xf32>
    %c0_12 = arith.constant 0 : index
    %c0_13 = arith.constant 0 : index
    %15 = vector.load %arg6[%c0_12, %c0_13] : memref<32x128xf32, #tpu.memory_space<vmem>>, vector<32x128xf32>
    %c0_14 = arith.constant 0 : index
    %c0_15 = arith.constant 0 : index
    %16 = vector.load %arg7[%c0_14, %c0_15] : memref<1x128xf32, #tpu.memory_space<vmem>>, vector<1x128xf32>
    %cst_16 = arith.constant dense<0.000000e+00> : vector<16x128xf32>
    %17 = tpu.matmul %14, %15, %cst_16 {dimension_numbers = #tpu.dot_dimension_numbers<[1], [0], [0], [1], [0, 0, 1, 1], [], []>} : vector<16x32xf32>, vector<32x128xf32>, vector<16x128xf32> -> vector<16x128xf32>
    %18 = vector.broadcast %16 : vector<1x128xf32> to vector<16x128xf32>
    %19 = arith.addf %17, %18 : vector<16x128xf32>
    %c0_17 = arith.constant 0 : index
    %c0_18 = arith.constant 0 : index
    %20 = vector.load %arg8[%c0_17, %c0_18] : memref<16x128xf32, #tpu.memory_space<vmem>>, vector<16x128xf32>
    tpu.vector_store %arg8[%c0_17, %c0_18], %19 {strides = array<i32>} : memref<16x128xf32, #tpu.memory_space<vmem>>, vector<16x128xf32>,
    return
  }
  func.func @transform_0(%arg0: i32) -> (i32, i32) {
    %c0_i32 = arith.constant 0 : i32
    %c0_i32_0 = arith.constant 0 : i32
    return %arg0, %c0_i32 : i32, i32
  }
  func.func @transform_1(%arg0: i32) -> (i32, i32) {
    %c0_i32 = arith.constant 0 : i32
    %c0_i32_0 = arith.constant 0 : i32
    %c0_i32_1 = arith.constant 0 : i32
    return %c0_i32, %c0_i32_0 : i32, i32
  }
  func.func @transform_2(%arg0: i32) -> (i32, i32) {
    %c0_i32 = arith.constant 0 : i32
    %c0_i32_0 = arith.constant 0 : i32
    %c0_i32_1 = arith.constant 0 : i32
    return %c0_i32, %c0_i32_0 : i32, i32
  }
  func.func @transform_3(%arg0: i32) -> (i32, i32) {
    %c0_i32 = arith.constant 0 : i32
    %c0_i32_0 = arith.constant 0 : i32
    %c0_i32_1 = arith.constant 0 : i32
    return %c0_i32, %c0_i32_0 : i32, i32
  }
  func.func @transform_4(%arg0: i32) -> (i32, i32) {
    %c0_i32 = arith.constant 0 : i32
    %c0_i32_0 = arith.constant 0 : i32
    %c0_i32_1 = arith.constant 0 : i32
    return %c0_i32, %c0_i32_0 : i32, i32
  }
  func.func @transform_5(%arg0: i32) -> (i32, i32) {
    %c0_i32 = arith.constant 0 : i32
    %c0_i32_0 = arith.constant 0 : i32
    %c0_i32_1 = arith.constant 0 : i32
    return %c0_i32, %c0_i32_0 : i32, i32
  }
  func.func @transform_6(%arg0: i32) -> (i32, i32) {
    %c0_i32 = arith.constant 0 : i32
    %c0_i32_0 = arith.constant 0 : i32
    %c0_i32_1 = arith.constant 0 : i32
    return %c0_i32, %c0_i32_0 : i32, i32
  }
  func.func @transform_7(%arg0: i32) -> (i32, i32) {
    %c0_i32 = arith.constant 0 : i32
    %c0_i32_0 = arith.constant 0 : i32
    return %arg0, %c0_i32 : i32, i32
  }
}

module attributes {stable_mosaic.version = 11 : i64} {
  func.func @_fused_mlp_kernel(%arg0: i32, %arg1: memref<16x32xf32, #tpu.memory_space<vmem>>, %arg2: memref<32x32xf32, #tpu.memory_space<vmem>>, %arg3: memref<1x32xf32, #tpu.memory_space<vmem>>, %arg4: memref<32x32xf32, #tpu.memory_space<vmem>>, %arg5: memref<1x32xf32, #tpu.memory_space<vmem>>, %arg6: memref<32x128xf32, #tpu.memory_space<vmem>>, %arg7: memref<1x128xf32, #tpu.memory_space<vmem>>, %arg8: memref<16x128xf32, #tpu.memory_space<vmem>>) attributes {dimension_semantics = [#tpu.dimension_semantics<parallel>], iteration_bounds = array<i64: 1>, scalar_prefetch = 0 : i64, scratch_operands = 0 : i64, tpu.core_type = #tpu.core_type<tc>, window_params = [{transform_indices = @transform_0, window_bounds = array<i64: 16, 32>}, {pipeline_mode = #tpu.pipeline_mode<synchronous>, transform_indices = @transform_1, window_bounds = array<i64: 32, 32>}, {pipeline_mode = #tpu.pipeline_mode<synchronous>, transform_indices = @transform_2, window_bounds = array<i64: 1, 32>}, {pipeline_mode = #tpu.pipeline_mode<synchronous>, transform_indices = @transform_3, window_bounds = array<i64: 32, 32>}, {pipeline_mode = #tpu.pipeline_mode<synchronous>, transform_indices = @transform_4, window_bounds = array<i64: 1, 32>}, {pipeline_mode = #tpu.pipeline_mode<synchronous>, transform_indices = @transform_5, window_bounds = array<i64: 32, 128>}, {pipeline_mode = #tpu.pipeline_mode<synchronous>, transform_indices = @transform_6, window_bounds = array<i64: 1, 128>}, {transform_indices = @transform_7, window_bounds = array<i64: 16, 128>}]} {
    %c0 = arith.constant 0 : index
    %c0_0 = arith.constant 0 : index
    %0 = vector.load %arg1[%c0, %c0_0] : memref<16x32xf32, #tpu.memory_space<vmem>>, vector<16x32xf32>
    %c0_1 = arith.constant 0 : index
    %c0_2 = arith.constant 0 : index
    %1 = vector.load %arg2[%c0_1, %c0_2] : memref<32x32xf32, #tpu.memory_space<vmem>>, vector<32x32xf32>
    %c0_3 = arith.constant 0 : index
    %c0_4 = arith.constant 0 : index
    %2 = vector.load %arg3[%c0_3, %c0_4] : memref<1x32xf32, #tpu.memory_space<vmem>>, vector<1x32xf32>
    %cst = arith.constant dense<0.000000e+00> : vector<16x32xf32>
    %3 = tpu.matmul %0, %1, %cst {dimension_numbers = #tpu.dot_dimension_numbers<[1], [0], [0], [1], [0, 0, 1, 1], [], []>} : vector<16x32xf32>, vector<32x32xf32>, vector<16x32xf32> -> vector<16x32xf32>
    %4 = vector.broadcast %2 : vector<1x32xf32> to vector<16x32xf32>
    %5 = arith.addf %3, %4 : vector<16x32xf32>
    %cst_5 = arith.constant 0.000000e+00 : f32
    %6 = vector.broadcast %cst_5 : f32 to vector<16x32xf32>
    %7 = arith.maximumf %5, %6 : vector<16x32xf32>
    %c0_6 = arith.constant 0 : index
    %c0_7 = arith.constant 0 : index
    %8 = vector.load %arg4[%c0_6, %c0_7] : memref<32x32xf32, #tpu.memory_space<vmem>>, vector<32x32xf32>
    %c0_8 = arith.constant 0 : index
    %c0_9 = arith.constant 0 : index
    %9 = vector.load %arg5[%c0_8, %c0_9] : memref<1x32xf32, #tpu.memory_space<vmem>>, vector<1x32xf32>
    %cst_10 = arith.constant dense<0.000000e+00> : vector<16x32xf32>
    %10 = tpu.matmul %7, %8, %cst_10 {dimension_numbers = #tpu.dot_dimension_numbers<[1], [0], [0], [1], [0, 0, 1, 1], [], []>} : vector<16x32xf32>, vector<32x32xf32>, vector<16x32xf32> -> vector<16x32xf32>
    %11 = vector.broadcast %9 : vector<1x32xf32> to vector<16x32xf32>
    %12 = arith.addf %10, %11 : vector<16x32xf32>
    %cst_11 = arith.constant 0.000000e+00 : f32
    %13 = vector.broadcast %cst_11 : f32 to vector<16x32xf32>
    %14 = arith.maximumf %12, %13 : vector<16x32xf32>
    %c0_12 = arith.constant 0 : index
    %c0_13 = arith.constant 0 : index
    %15 = vector.load %arg6[%c0_12, %c0_13] : memref<32x128xf32, #tpu.memory_space<vmem>>, vector<32x128xf32>
    %c0_14 = arith.constant 0 : index
    %c0_15 = arith.constant 0 : index
    %16 = vector.load %arg7[%c0_14, %c0_15] : memref<1x128xf32, #tpu.memory_space<vmem>>, vector<1x128xf32>
    %cst_16 = arith.constant dense<0.000000e+00> : vector<16x128xf32>
    %17 = tpu.matmul %14, %15, %cst_16 {dimension_numbers = #tpu.dot_dimension_numbers<[1], [0], [0], [1], [0, 0, 1, 1], [], []>} : vector<16x32xf32>, vector<32x128xf32>, vector<16x128xf32> -> vector<16x128xf32>
    %18 = vector.broadcast %16 : vector<1x128xf32> to vector<16x128xf32>
    %19 = arith.addf %17, %18 : vector<16x128xf32>
    %c0_17 = arith.constant 0 : index
    %c0_18 = arith.constant 0 : index
    %20 = vector.load %arg8[%c0_17, %c0_18] : memref<16x128xf32, #tpu.memory_space<vmem>>, vector<16x128xf32>
    tpu.vector_store %arg8[%c0_17, %c0_18], %19 {strides = array<i32>} : memref<16x128xf32, #tpu.memory_space<vmem>>, vector<16x128xf32>,
    return
  }
  func.func @transform_0(%arg0: i32) -> (i32, i32) {
    %c0_i32 = arith.constant 0 : i32
    %c0_i32_0 = arith.constant 0 : i32
    return %arg0, %c0_i32 : i32, i32
  }
  func.func @transform_1(%arg0: i32) -> (i32, i32) {
    %c0_i32 = arith.constant 0 : i32
    %c0_i32_0 = arith.constant 0 : i32
    %c0_i32_1 = arith.constant 0 : i32
    return %c0_i32, %c0_i32_0 : i32, i32
  }
  func.func @transform_2(%arg0: i32) -> (i32, i32) {
    %c0_i32 = arith.constant 0 : i32
    %c0_i32_0 = arith.constant 0 : i32
    %c0_i32_1 = arith.constant 0 : i32
    return %c0_i32, %c0_i32_0 : i32, i32
  }
  func.func @transform_3(%arg0: i32) -> (i32, i32) {
    %c0_i32 = arith.constant 0 : i32
    %c0_i32_0 = arith.constant 0 : i32
    %c0_i32_1 = arith.constant 0 : i32
    return %c0_i32, %c0_i32_0 : i32, i32
  }
  func.func @transform_4(%arg0: i32) -> (i32, i32) {
    %c0_i32 = arith.constant 0 : i32
    %c0_i32_0 = arith.constant 0 : i32
    %c0_i32_1 = arith.constant 0 : i32
    return %c0_i32, %c0_i32_0 : i32, i32
  }
  func.func @transform_5(%arg0: i32) -> (i32, i32) {
    %c0_i32 = arith.constant 0 : i32
    %c0_i32_0 = arith.constant 0 : i32
    %c0_i32_1 = arith.constant 0 : i32
    return %c0_i32, %c0_i32_0 : i32, i32
  }
  func.func @transform_6(%arg0: i32) -> (i32, i32) {
    %c0_i32 = arith.constant 0 : i32
    %c0_i32_0 = arith.constant 0 : i32
    %c0_i32_1 = arith.constant 0 : i32
    return %c0_i32, %c0_i32_0 : i32, i32
  }
  func.func @transform_7(%arg0: i32) -> (i32, i32) {
    %c0_i32 = arith.constant 0 : i32
    %c0_i32_0 = arith.constant 0 : i32
    return %arg0, %c0_i32 : i32, i32
  }
}

</mosaic_0001>

<llo_original>
// kernel: tpu_custom_call.1
$region0: #{tpu_custom_call.1}
  #allocation0 [shape = 'u32[]', space=smem, size = 0x4, offset = 0x4, fixed_abs, tag = 'smem constant byte address 0x4 - core index']
  #allocation1 [shape = 'u32[144,128]{1,0:T(1,128)}', space=vmem, size = 0x12000, scoped, tag = 'internal scratch']
  %s0 = inlined_call_operand.hbm [shape: f32[16,32], index: 0, kind: input, shape index: {}]
  %s1 = inlined_call_operand.hbm [shape: f32[32,32], index: 1, kind: input, shape index: {}]
  %s2 = inlined_call_operand.vmem [shape: f32[1,32], index: 2, kind: input, shape index: {}]
  %s3 = inlined_call_operand.hbm [shape: f32[32,32], index: 3, kind: input, shape index: {}]
  %s4 = inlined_call_operand.vmem [shape: f32[1,32], index: 4, kind: input, shape index: {}]
  %s5 = inlined_call_operand.hbm [shape: f32[32,128], index: 5, kind: input, shape index: {}]
  %s6 = inlined_call_operand.vmem [shape: f32[1,128], index: 6, kind: input, shape index: {}]
  %s7 = inlined_call_operand.hbm [shape: f32[16,128], index: 7, kind: output, shape index: {}]
  %s8 = sld [smem:[#allocation0]]
  $region54: #{tpu_custom_call.1} parent=0
    _
  %s10 = ssub.s32 1, %s8
  %s11 = scalar_select 0, %s10, %s8
  $region1: #{tpu_custom_call.1} parent=0
    #allocation2 [shape = 'u8[8192]{0}', space=vmem, size = 0x2000, scoped, tag = 'input window, operand 0, single buffered']
    #allocation3 [shape = 's32[1]{0}', space=sflag, size = 0x4, scoped, tag = 'scoped memory for tpu_custom_call.1']
    #allocation4 [shape = 's32[1]{0}', space=sflag, size = 0x4, scoped, tag = 'scoped memory for tpu_custom_call.1']
    #allocation5 [shape = 'u8[16384]{0}', space=vmem, size = 0x4000, scoped, tag = 'input window, operand 1, single buffered']
    #allocation6 [shape = 's32[1]{0}', space=sflag, size = 0x4, scoped, tag = 'scoped memory for tpu_custom_call.1']
    #allocation7 [shape = 'u8[16384]{0}', space=vmem, size = 0x4000, scoped, tag = 'input window, operand 3, single buffered']
    #allocation8 [shape = 'u8[16384]{0}', space=vmem, size = 0x4000, scoped, tag = 'input window, operand 5, single buffered']
    #allocation9 [shape = 's32[1]{0}', space=sflag, size = 0x4, scoped, tag = 'scoped memory for tpu_custom_call.1']
    #allocation10 [shape = 'u8[8192]{0}', space=vmem, size = 0x2000, scoped, tag = 'output window, operand 0, single buffered']
    %12 = vsyncpa [#allocation3], 0
    %13 = vsyncpa [#allocation6], 0
    %14 = vsyncpa [#allocation9], 0
    %15 = vsyncpa [#allocation4], 0
    // Predicated region
    $region2: #{tpu_custom_call.1} parent=1 // pred_check
      _
    $region3: #{tpu_custom_call.1} parent=1 // pred_check_branch
      %17 = sbr.rel (0) target = $region5
    $region4: #{tpu_custom_call.1} parent=1 // pred_region
      %s19 = ssub.s32 256, 256
      %20 = vsyncadd [#allocation3], %s19
      %s21 = sshll.u32 [#allocation2], 4
      %s22 = int_to_ptr.vmem [resolvable:$true] %s21
      %27 = dma.hbm_to_vmem [thread:$0]  %s0, 256, %s22, [#allocation3], 128, 128, 8
    $region5: #{tpu_custom_call.1} parent=1 // pred_fallthru
      _
    // Predicated region
    $region6: #{tpu_custom_call.1} parent=1 // pred_check
      _
    $region7: #{tpu_custom_call.1} parent=1 // pred_check_branch
      %29 = sbr.rel (0) target = $region9
    $region8: #{tpu_custom_call.1} parent=1 // pred_region
      %s31 = ssub.s32 512, 512
      %32 = vsyncadd [#allocation6], %s31
      %s33 = sshll.u32 [#allocation5], 4
      %s34 = int_to_ptr.vmem [resolvable:$true] %s33
      %39 = dma.hbm_to_vmem [thread:$0]  %s1, 512, %s34, [#allocation6], 128, 128, 8
    $region9: #{tpu_custom_call.1} parent=1 // pred_fallthru
      _
    // Predicated region
    $region10: #{tpu_custom_call.1} parent=1 // pred_check
      _
    $region11: #{tpu_custom_call.1} parent=1 // pred_check_branch
      %41 = sbr.rel (0) target = $region13
    $region12: #{tpu_custom_call.1} parent=1 // pred_region
      _
    $region13: #{tpu_custom_call.1} parent=1 // pred_fallthru
      _
    // Predicated region
    $region14: #{tpu_custom_call.1} parent=1 // pred_check
      _
    $region15: #{tpu_custom_call.1} parent=1 // pred_check_branch
      %43 = sbr.rel (0) target = $region17
    $region16: #{tpu_custom_call.1} parent=1 // pred_region
      %s45 = ssub.s32 512, 512
      %46 = vsyncadd [#allocation6], %s45
      %s47 = sshll.u32 [#allocation7], 4
      %s48 = int_to_ptr.vmem [resolvable:$true] %s47
      %53 = dma.hbm_to_vmem [thread:$0]  %s3, 512, %s48, [#allocation6], 128, 128, 8
    $region17: #{tpu_custom_call.1} parent=1 // pred_fallthru
      _
    // Predicated region
    $region18: #{tpu_custom_call.1} parent=1 // pred_check
      _
    $region19: #{tpu_custom_call.1} parent=1 // pred_check_branch
      %55 = sbr.rel (0) target = $region21
    $region20: #{tpu_custom_call.1} parent=1 // pred_region
      _
    $region21: #{tpu_custom_call.1} parent=1 // pred_fallthru
      _
    // Predicated region
    $region22: #{tpu_custom_call.1} parent=1 // pred_check
      _
    $region23: #{tpu_custom_call.1} parent=1 // pred_check_branch
      %57 = sbr.rel (0) target = $region25
    $region24: #{tpu_custom_call.1} parent=1 // pred_region
      %s59 = ssub.s32 512, 512
      %60 = vsyncadd [#allocation9], %s59
      %s61 = sshll.u32 [#allocation8], 4
      %s62 = int_to_ptr.vmem [resolvable:$true] %s61
      %67 = dma.hbm_to_vmem [thread:$0]  %s5, 512, %s62, [#allocation9], 128, 128, 8
    $region25: #{tpu_custom_call.1} parent=1 // pred_fallthru
      _
    // Predicated region
    $region26: #{tpu_custom_call.1} parent=1 // pred_check
      _
    $region27: #{tpu_custom_call.1} parent=1 // pred_check_branch
      %69 = sbr.rel (0) target = $region29
    $region28: #{tpu_custom_call.1} parent=1 // pred_region
      _
    $region29: #{tpu_custom_call.1} parent=1 // pred_fallthru
      _
    // Predicated region
    $region30: #{tpu_custom_call.1} parent=1 // pred_check
      _
    $region31: #{tpu_custom_call.1} parent=1 // pred_check_branch
      %71 = sbr.rel (0) target = $region33
    $region32: #{tpu_custom_call.1} parent=1 // pred_region
      %72 = dma.done [#allocation3], 256
    $region33: #{tpu_custom_call.1} parent=1 // pred_fallthru
      _
    // Predicated region
    $region34: #{tpu_custom_call.1} parent=1 // pred_check
      _
    $region35: #{tpu_custom_call.1} parent=1 // pred_check_branch
      %74 = sbr.rel (0) target = $region37
    $region36: #{tpu_custom_call.1} parent=1 // pred_region
      %75 = dma.done [#allocation6], 512
    $region37: #{tpu_custom_call.1} parent=1 // pred_fallthru
      _
    // Predicated region
    $region38: #{tpu_custom_call.1} parent=1 // pred_check
      _
    $region39: #{tpu_custom_call.1} parent=1 // pred_check_branch
      %77 = sbr.rel (0) target = $region41
    $region40: #{tpu_custom_call.1} parent=1 // pred_region
      %78 = dma.done [#allocation6], 512
    $region41: #{tpu_custom_call.1} parent=1 // pred_fallthru
      _
    // Predicated region
    $region42: #{tpu_custom_call.1} parent=1 // pred_check
      _
    $region43: #{tpu_custom_call.1} parent=1 // pred_check_branch
      %80 = sbr.rel (0) target = $region45
    $region44: #{tpu_custom_call.1} parent=1 // pred_region
      %81 = dma.done [#allocation9], 512
    $region45: #{tpu_custom_call.1} parent=1 // pred_fallthru
      _
    %v82 = vld [vmem:[#allocation2] sm:$0xff]
    %v83 = vld [vmem:[#allocation2 + $0x8] sm:$0xff]
    %v84 = vld [vmem:[#allocation5] sm:$0xff]
    %v85 = vld [vmem:[#allocation5 + $0x8] sm:$0xff]
    %v86 = vld [vmem:[#allocation5 + $0x10] sm:$0xff]
    %v87 = vld [vmem:[#allocation5 + $0x18] sm:$0xff]
    %v88 = vld [vmem:[%s2] sm:$0x1]
    %v90 = vlaneseq
    %v91 = vshrl.u32 %v90, 7
    %v92 = vsub.s32 0, %v91
    %v93 = vrot.slane %v88, %v92
    %vm95 = vcmask 261120
    %v97 = vsel %vm95, %v82, 0
    %v100 = vsel %vm95, %v83, 0
    %102 = vmatprep.subr.mxu0 0.0
    %103 = vmatpush1.msra.mxu0 %v84
    %104 = vmatprep.subr.mxu0 0.0
    %105 = vmatpush1.msra.mxu0 %v85
    %106 = vmatprep.subr.mxu0 0.0
    %107 = vmatpush1.msra.mxu0 %v86
    %108 = vmatprep.subr.mxu0 0.0
    %109 = vmatpush1.msra.mxu0 %v87
    %110 = vmatprep.subr.mxu0 0.0
    %111 = vmatpush1.msra.mxu0 0.0
    %112 = vmatprep.subr.mxu0 0.0
    %113 = vmatpush1.msra.mxu0 0.0
    %114 = vmatprep.subr.mxu0 0.0
    %115 = vmatpush1.msra.mxu0 0.0
    %116 = vmatprep.subr.mxu0 0.0
    %117 = vmatpush1.msra.mxu0 0.0
    %118 = vmatprep.subr.mxu0 0.0
    %119 = vmatpush1.msra.mxu0 0.0
    %120 = vmatprep.subr.mxu0 0.0
    %121 = vmatpush1.msra.mxu0 0.0
    %122 = vmatprep.subr.mxu0 0.0
    %123 = vmatpush1.msra.mxu0 0.0
    %124 = vmatprep.subr.mxu0 0.0
    %125 = vmatpush1.msra.mxu0 0.0
    %126 = vmatprep.subr.mxu0 0.0
    %127 = vmatpush1.msra.mxu0 0.0
    %128 = vmatprep.subr.mxu0 0.0
    %129 = vmatpush1.msra.mxu0 0.0
    %130 = vmatprep.subr.mxu0 0.0
    %131 = vmatpush1.msra.mxu0 0.0
    %132 = vmatprep.subr.mxu0 0.0
    %133 = vmatpush1.msra.mxu0 0.0
    %134 = vmatprep.subr.mxu0 0.0
    %135 = vmatpush1.msra.mxu0 0.0
    %136 = vmatprep.subr.mxu0 0.0
    %137 = vmatpush1.msra.mxu0 0.0
    %138 = vmatprep.subr.mxu0 0.0
    %139 = vmatpush1.msra.mxu0 0.0
    %140 = vmatprep.subr.mxu0 0.0
    %141 = vmatpush1.msra.mxu0 0.0
    %142 = vmatprep.subr.mxu0 0.0
    %143 = vmatpush1.msra.mxu0 0.0
    %144 = vmatprep.subr.mxu0 0.0
    %145 = vmatpush1.msra.mxu0 0.0
    %146 = vmatprep.subr.mxu0 0.0
    %147 = vmatpush1.msra.mxu0 0.0
    %148 = vmatprep.subr.mxu0 0.0
    %149 = vmatpush1.msra.mxu0 0.0
    %150 = vmatprep.subr.mxu0 0.0
    %151 = vmatpush1.msra.mxu0 0.0
    %152 = vmatprep.subr.mxu0 0.0
    %153 = vmatpush1.msra.mxu0 0.0
    %154 = vmatprep.subr.mxu0 0.0
    %155 = vmatpush1.msra.mxu0 0.0
    %156 = vmatprep.subr.mxu0 0.0
    %157 = vmatpush1.msra.mxu0 0.0
    %158 = vmatprep.subr.mxu0 0.0
    %159 = vmatpush1.msra.mxu0 0.0
    %160 = vmatprep.subr.mxu0 0.0
    %161 = vmatpush1.msra.mxu0 0.0
    %162 = vmatprep.subr.mxu0 0.0
    %163 = vmatpush1.msra.mxu0 0.0
    %164 = vmatprep.subr.mxu0 0.0
    %165 = vmatpush1.msra.mxu0 0.0
    %166 = vmatprep.mubr.f32.mxu0 0.0
    %167 = vmatmul.mubr.f32.gmra.mrb[0].mxu0 %v97
    %v168 = vpop.f32.mrb[0].mxu0
    %v169 = vadd.f32 %v93, %v168
    %v170 = vpop.f32.mrb[0].mxu0
    %171 = vmatprep.mubr.f32.mxu0 0.0
    %172 = vmatmul.mubr.f32.gmra.mrb[0].mxu0 %v100
    %v173 = vpop.f32.mrb[0].mxu0
    %v174 = vadd.f32 %v93, %v173
    %v175 = vpop.f32.mrb[0].mxu0
    %176 = vdwg.mxu0
    %v177 = vmax.f32 %v169, 0.0
    %v178 = vmax.f32 %v174, 0.0
    %v179 = vld [vmem:[#allocation7] sm:$0xff]
    %v180 = vld [vmem:[#allocation7 + $0x8] sm:$0xff]
    %v181 = vld [vmem:[#allocation7 + $0x10] sm:$0xff]
    %v182 = vld [vmem:[#allocation7 + $0x18] sm:$0xff]
    %v183 = vld [vmem:[%s4] sm:$0x1]
    %v185 = vlaneseq
    %v186 = vshrl.u32 %v185, 7
    %v187 = vsub.s32 0, %v186
    %v188 = vrot.slane %v183, %v187
    %v191 = vsel %vm95, %v177, 0
    %v194 = vsel %vm95, %v178, 0
    %196 = vmatprep.subr.mxu0 0.0
    %197 = vmatpush1.msra.mxu0 %v179
    %198 = vmatprep.subr.mxu0 0.0
    %199 = vmatpush1.msra.mxu0 %v180
    %200 = vmatprep.subr.mxu0 0.0
    %201 = vmatpush1.msra.mxu0 %v181
    %202 = vmatprep.subr.mxu0 0.0
    %203 = vmatpush1.msra.mxu0 %v182
    %204 = vmatprep.subr.mxu0 0.0
    %205 = vmatpush1.msra.mxu0 0.0
    %206 = vmatprep.subr.mxu0 0.0
    %207 = vmatpush1.msra.mxu0 0.0
    %208 = vmatprep.subr.mxu0 0.0
    %209 = vmatpush1.msra.mxu0 0.0
    %210 = vmatprep.subr.mxu0 0.0
    %211 = vmatpush1.msra.mxu0 0.0
    %212 = vmatprep.subr.mxu0 0.0
    %213 = vmatpush1.msra.mxu0 0.0
    %214 = vmatprep.subr.mxu0 0.0
    %215 = vmatpush1.msra.mxu0 0.0
    %216 = vmatprep.subr.mxu0 0.0
    %217 = vmatpush1.msra.mxu0 0.0
    %218 = vmatprep.subr.mxu0 0.0
    %219 = vmatpush1.msra.mxu0 0.0
    %220 = vmatprep.subr.mxu0 0.0
    %221 = vmatpush1.msra.mxu0 0.0
    %222 = vmatprep.subr.mxu0 0.0
    %223 = vmatpush1.msra.mxu0 0.0
    %224 = vmatprep.subr.mxu0 0.0
    %225 = vmatpush1.msra.mxu0 0.0
    %226 = vmatprep.subr.mxu0 0.0
    %227 = vmatpush1.msra.mxu0 0.0
    %228 = vmatprep.subr.mxu0 0.0
    %229 = vmatpush1.msra.mxu0 0.0
    %230 = vmatprep.subr.mxu0 0.0
    %231 = vmatpush1.msra.mxu0 0.0
    %232 = vmatprep.subr.mxu0 0.0
    %233 = vmatpush1.msra.mxu0 0.0
    %234 = vmatprep.subr.mxu0 0.0
    %235 = vmatpush1.msra.mxu0 0.0
    %236 = vmatprep.subr.mxu0 0.0
    %237 = vmatpush1.msra.mxu0 0.0
    %238 = vmatprep.subr.mxu0 0.0
    %239 = vmatpush1.msra.mxu0 0.0
    %240 = vmatprep.subr.mxu0 0.0
    %241 = vmatpush1.msra.mxu0 0.0
    %242 = vmatprep.subr.mxu0 0.0
    %243 = vmatpush1.msra.mxu0 0.0
    %244 = vmatprep.subr.mxu0 0.0
    %245 = vmatpush1.msra.mxu0 0.0
    %246 = vmatprep.subr.mxu0 0.0
    %247 = vmatpush1.msra.mxu0 0.0
    %248 = vmatprep.subr.mxu0 0.0
    %249 = vmatpush1.msra.mxu0 0.0
    %250 = vmatprep.subr.mxu0 0.0
    %251 = vmatpush1.msra.mxu0 0.0
    %252 = vmatprep.subr.mxu0 0.0
    %253 = vmatpush1.msra.mxu0 0.0
    %254 = vmatprep.subr.mxu0 0.0
    %255 = vmatpush1.msra.mxu0 0.0
    %256 = vmatprep.subr.mxu0 0.0
    %257 = vmatpush1.msra.mxu0 0.0
    %258 = vmatprep.subr.mxu0 0.0
    %259 = vmatpush1.msra.mxu0 0.0
    %260 = vmatprep.mubr.f32.mxu0 0.0
    %261 = vmatmul.mubr.f32.gmra.mrb[0].mxu0 %v191
    %v262 = vpop.f32.mrb[0].mxu0
    %v263 = vadd.f32 %v188, %v262
    %v264 = vpop.f32.mrb[0].mxu0
    %265 = vmatprep.mubr.f32.mxu0 0.0
    %266 = vmatmul.mubr.f32.gmra.mrb[0].mxu0 %v194
    %v267 = vpop.f32.mrb[0].mxu0
    %v268 = vadd.f32 %v188, %v267
    %v269 = vpop.f32.mrb[0].mxu0
    %270 = vdwg.mxu0
    %v271 = vmax.f32 %v263, 0.0
    %v272 = vmax.f32 %v268, 0.0
    %v273 = vld [vmem:[#allocation8] sm:$0xff]
    %v274 = vld [vmem:[#allocation8 + $0x8] sm:$0xff]
    %v275 = vld [vmem:[#allocation8 + $0x10] sm:$0xff]
    %v276 = vld [vmem:[#allocation8 + $0x18] sm:$0xff]
    %v277 = vld [vmem:[%s6] sm:$0x1]
    %v279 = vlaneseq
    %v280 = vshrl.u32 %v279, 7
    %v281 = vsub.s32 0, %v280
    %v282 = vrot.slane %v277, %v281
    %v285 = vsel %vm95, %v271, 0
    %v288 = vsel %vm95, %v272, 0
    %290 = vmatprep.subr.mxu0 0.0
    %291 = vmatpush1.msra.mxu0 %v273
    %292 = vmatprep.subr.mxu0 0.0
    %293 = vmatpush1.msra.mxu0 %v274
    %294 = vmatprep.subr.mxu0 0.0
    %295 = vmatpush1.msra.mxu0 %v275
    %296 = vmatprep.subr.mxu0 0.0
    %297 = vmatpush1.msra.mxu0 %v276
    %298 = vmatprep.subr.mxu0 0.0
    %299 = vmatpush1.msra.mxu0 0.0
    %300 = vmatprep.subr.mxu0 0.0
    %301 = vmatpush1.msra.mxu0 0.0
    %302 = vmatprep.subr.mxu0 0.0
    %303 = vmatpush1.msra.mxu0 0.0
    %304 = vmatprep.subr.mxu0 0.0
    %305 = vmatpush1.msra.mxu0 0.0
    %306 = vmatprep.subr.mxu0 0.0
    %307 = vmatpush1.msra.mxu0 0.0
    %308 = vmatprep.subr.mxu0 0.0
    %309 = vmatpush1.msra.mxu0 0.0
    %310 = vmatprep.subr.mxu0 0.0
    %311 = vmatpush1.msra.mxu0 0.0
    %312 = vmatprep.subr.mxu0 0.0
    %313 = vmatpush1.msra.mxu0 0.0
    %314 = vmatprep.subr.mxu0 0.0
    %315 = vmatpush1.msra.mxu0 0.0
    %316 = vmatprep.subr.mxu0 0.0
    %317 = vmatpush1.msra.mxu0 0.0
    %318 = vmatprep.subr.mxu0 0.0
    %319 = vmatpush1.msra.mxu0 0.0
    %320 = vmatprep.subr.mxu0 0.0
    %321 = vmatpush1.msra.mxu0 0.0
    %322 = vmatprep.subr.mxu0 0.0
    %323 = vmatpush1.msra.mxu0 0.0
    %324 = vmatprep.subr.mxu0 0.0
    %325 = vmatpush1.msra.mxu0 0.0
    %326 = vmatprep.subr.mxu0 0.0
    %327 = vmatpush1.msra.mxu0 0.0
    %328 = vmatprep.subr.mxu0 0.0
    %329 = vmatpush1.msra.mxu0 0.0
    %330 = vmatprep.subr.mxu0 0.0
    %331 = vmatpush1.msra.mxu0 0.0
    %332 = vmatprep.subr.mxu0 0.0
    %333 = vmatpush1.msra.mxu0 0.0
    %334 = vmatprep.subr.mxu0 0.0
    %335 = vmatpush1.msra.mxu0 0.0
    %336 = vmatprep.subr.mxu0 0.0
    %337 = vmatpush1.msra.mxu0 0.0
    %338 = vmatprep.subr.mxu0 0.0
    %339 = vmatpush1.msra.mxu0 0.0
    %340 = vmatprep.subr.mxu0 0.0
    %341 = vmatpush1.msra.mxu0 0.0
    %342 = vmatprep.subr.mxu0 0.0
    %343 = vmatpush1.msra.mxu0 0.0
    %344 = vmatprep.subr.mxu0 0.0
    %345 = vmatpush1.msra.mxu0 0.0
    %346 = vmatprep.subr.mxu0 0.0
    %347 = vmatpush1.msra.mxu0 0.0
    %348 = vmatprep.subr.mxu0 0.0
    %349 = vmatpush1.msra.mxu0 0.0
    %350 = vmatprep.subr.mxu0 0.0
    %351 = vmatpush1.msra.mxu0 0.0
    %352 = vmatprep.subr.mxu0 0.0
    %353 = vmatpush1.msra.mxu0 0.0
    %354 = vmatprep.mubr.f32.mxu0 0.0
    %355 = vmatmul.mubr.f32.gmra.mrb[0].mxu0 %v285
    %v356 = vpop.f32.mrb[0].mxu0
    %v357 = vadd.f32 %v282, %v356
    %v358 = vpop.f32.mrb[0].mxu0
    %359 = vmatprep.mubr.f32.mxu0 0.0
    %360 = vmatmul.mubr.f32.gmra.mrb[0].mxu0 %v288
    %v361 = vpop.f32.mrb[0].mxu0
    %v362 = vadd.f32 %v282, %v361
    %v363 = vpop.f32.mrb[0].mxu0
    %364 = vdwg.mxu0
    %365 = vst [vmem:[#allocation10] sm:$0xff] %v357
    %366 = vst [vmem:[#allocation10 + $0x8] sm:$0xff] %v362
    // Predicated region
    $region46: #{tpu_custom_call.1} parent=1 // pred_check
      _
    $region47: #{tpu_custom_call.1} parent=1 // pred_check_branch
      %368 = sbr.rel (0) target = $region49
    $region48: #{tpu_custom_call.1} parent=1 // pred_region
      %s370 = ssub.s32 256, 256
      %371 = vsyncadd [#allocation4], %s370
      %s372 = sshll.u32 [#allocation10], 4
      %s373 = int_to_ptr.vmem [resolvable:$true] %s372
      %378 = dma.vmem_to_hbm [thread:$0]  %s373, 256, %s7, [#allocation4], 128, 128, 8
    $region49: #{tpu_custom_call.1} parent=1 // pred_fallthru
      _
    // Predicated region
    $region50: #{tpu_custom_call.1} parent=1 // pred_check
      _
    $region51: #{tpu_custom_call.1} parent=1 // pred_check_branch
      %380 = sbr.rel (0) target = $region53
    $region52: #{tpu_custom_call.1} parent=1 // pred_region
      %381 = dma.done [#allocation4], 256
    $region53: #{tpu_custom_call.1} parent=1 // pred_fallthru
      _
    %382 = vsyncpa [#allocation3], 1
    %383 = vsyncpa [#allocation6], 1
    %384 = vsyncpa [#allocation9], 1
    %385 = vsyncpa [#allocation4], 1

// kernel: tpu_custom_call.1
$region0: #{tpu_custom_call.1}
  #allocation0 [shape = 'u32[]', space=smem, size = 0x4, offset = 0x4, fixed_abs, tag = 'smem constant byte address 0x4 - core index']
  #allocation1 [shape = 'u32[144,128]{1,0:T(1,128)}', space=vmem, size = 0x12000, scoped, tag = 'internal scratch']
  %s0 = inlined_call_operand.hbm [shape: f32[16,32], index: 0, kind: input, shape index: {}]
  %s1 = inlined_call_operand.hbm [shape: f32[32,32], index: 1, kind: input, shape index: {}]
  %s2 = inlined_call_operand.vmem [shape: f32[1,32], index: 2, kind: input, shape index: {}]
  %s3 = inlined_call_operand.hbm [shape: f32[32,32], index: 3, kind: input, shape index: {}]
  %s4 = inlined_call_operand.vmem [shape: f32[1,32], index: 4, kind: input, shape index: {}]
  %s5 = inlined_call_operand.hbm [shape: f32[32,128], index: 5, kind: input, shape index: {}]
  %s6 = inlined_call_operand.vmem [shape: f32[1,128], index: 6, kind: input, shape index: {}]
  %s7 = inlined_call_operand.hbm [shape: f32[16,128], index: 7, kind: output, shape index: {}]
  %s8 = sld [smem:[#allocation0]]
  $region54: #{tpu_custom_call.1} parent=0
    _
  %s10 = ssub.s32 1, %s8
  %s11 = scalar_select 0, %s10, %s8
  $region1: #{tpu_custom_call.1} parent=0
    #allocation2 [shape = 'u8[8192]{0}', space=vmem, size = 0x2000, scoped, tag = 'input window, operand 0, single buffered']
    #allocation3 [shape = 's32[1]{0}', space=sflag, size = 0x4, scoped, tag = 'scoped memory for tpu_custom_call.1']
    #allocation4 [shape = 's32[1]{0}', space=sflag, size = 0x4, scoped, tag = 'scoped memory for tpu_custom_call.1']
    #allocation5 [shape = 'u8[16384]{0}', space=vmem, size = 0x4000, scoped, tag = 'input window, operand 1, single buffered']
    #allocation6 [shape = 's32[1]{0}', space=sflag, size = 0x4, scoped, tag = 'scoped memory for tpu_custom_call.1']
    #allocation7 [shape = 'u8[16384]{0}', space=vmem, size = 0x4000, scoped, tag = 'input window, operand 3, single buffered']
    #allocation8 [shape = 'u8[16384]{0}', space=vmem, size = 0x4000, scoped, tag = 'input window, operand 5, single buffered']
    #allocation9 [shape = 's32[1]{0}', space=sflag, size = 0x4, scoped, tag = 'scoped memory for tpu_custom_call.1']
    #allocation10 [shape = 'u8[8192]{0}', space=vmem, size = 0x2000, scoped, tag = 'output window, operand 0, single buffered']
    %12 = vsyncpa [#allocation3], 0
    %13 = vsyncpa [#allocation6], 0
    %14 = vsyncpa [#allocation9], 0
    %15 = vsyncpa [#allocation4], 0
    // Predicated region
    $region2: #{tpu_custom_call.1} parent=1 // pred_check
      _
    $region3: #{tpu_custom_call.1} parent=1 // pred_check_branch
      %17 = sbr.rel (0) target = $region5
    $region4: #{tpu_custom_call.1} parent=1 // pred_region
      %s19 = ssub.s32 256, 256
      %20 = vsyncadd [#allocation3], %s19
      %s21 = sshll.u32 [#allocation2], 4
      %s22 = int_to_ptr.vmem [resolvable:$true] %s21
      %27 = dma.hbm_to_vmem [thread:$0]  %s0, 256, %s22, [#allocation3], 128, 128, 8
    $region5: #{tpu_custom_call.1} parent=1 // pred_fallthru
      _
    // Predicated region
    $region6: #{tpu_custom_call.1} parent=1 // pred_check
      _
    $region7: #{tpu_custom_call.1} parent=1 // pred_check_branch
      %29 = sbr.rel (0) target = $region9
    $region8: #{tpu_custom_call.1} parent=1 // pred_region
      %s31 = ssub.s32 512, 512
      %32 = vsyncadd [#allocation6], %s31
      %s33 = sshll.u32 [#allocation5], 4
      %s34 = int_to_ptr.vmem [resolvable:$true] %s33
      %39 = dma.hbm_to_vmem [thread:$0]  %s1, 512, %s34, [#allocation6], 128, 128, 8
    $region9: #{tpu_custom_call.1} parent=1 // pred_fallthru
      _
    // Predicated region
    $region10: #{tpu_custom_call.1} parent=1 // pred_check
      _
    $region11: #{tpu_custom_call.1} parent=1 // pred_check_branch
      %41 = sbr.rel (0) target = $region13
    $region12: #{tpu_custom_call.1} parent=1 // pred_region
      _
    $region13: #{tpu_custom_call.1} parent=1 // pred_fallthru
      _
    // Predicated region
    $region14: #{tpu_custom_call.1} parent=1 // pred_check
      _
    $region15: #{tpu_custom_call.1} parent=1 // pred_check_branch
      %43 = sbr.rel (0) target = $region17
    $region16: #{tpu_custom_call.1} parent=1 // pred_region
      %s45 = ssub.s32 512, 512
      %46 = vsyncadd [#allocation6], %s45
      %s47 = sshll.u32 [#allocation7], 4
      %s48 = int_to_ptr.vmem [resolvable:$true] %s47
      %53 = dma.hbm_to_vmem [thread:$0]  %s3, 512, %s48, [#allocation6], 128, 128, 8
    $region17: #{tpu_custom_call.1} parent=1 // pred_fallthru
      _
    // Predicated region
    $region18: #{tpu_custom_call.1} parent=1 // pred_check
      _
    $region19: #{tpu_custom_call.1} parent=1 // pred_check_branch
      %55 = sbr.rel (0) target = $region21
    $region20: #{tpu_custom_call.1} parent=1 // pred_region
      _
    $region21: #{tpu_custom_call.1} parent=1 // pred_fallthru
      _
    // Predicated region
    $region22: #{tpu_custom_call.1} parent=1 // pred_check
      _
    $region23: #{tpu_custom_call.1} parent=1 // pred_check_branch
      %57 = sbr.rel (0) target = $region25
    $region24: #{tpu_custom_call.1} parent=1 // pred_region
      %s59 = ssub.s32 512, 512
      %60 = vsyncadd [#allocation9], %s59
      %s61 = sshll.u32 [#allocation8], 4
      %s62 = int_to_ptr.vmem [resolvable:$true] %s61
      %67 = dma.hbm_to_vmem [thread:$0]  %s5, 512, %s62, [#allocation9], 128, 128, 8
    $region25: #{tpu_custom_call.1} parent=1 // pred_fallthru
      _
    // Predicated region
    $region26: #{tpu_custom_call.1} parent=1 // pred_check
      _
    $region27: #{tpu_custom_call.1} parent=1 // pred_check_branch
      %69 = sbr.rel (0) target = $region29
    $region28: #{tpu_custom_call.1} parent=1 // pred_region
      _
    $region29: #{tpu_custom_call.1} parent=1 // pred_fallthru
      _
    // Predicated region
    $region30: #{tpu_custom_call.1} parent=1 // pred_check
      _
    $region31: #{tpu_custom_call.1} parent=1 // pred_check_branch
      %71 = sbr.rel (0) target = $region33
    $region32: #{tpu_custom_call.1} parent=1 // pred_region
      %72 = dma.done [#allocation3], 256
    $region33: #{tpu_custom_call.1} parent=1 // pred_fallthru
      _
    // Predicated region
    $region34: #{tpu_custom_call.1} parent=1 // pred_check
      _
    $region35: #{tpu_custom_call.1} parent=1 // pred_check_branch
      %74 = sbr.rel (0) target = $region37
    $region36: #{tpu_custom_call.1} parent=1 // pred_region
      %75 = dma.done [#allocation6], 512
    $region37: #{tpu_custom_call.1} parent=1 // pred_fallthru
      _
    // Predicated region
    $region38: #{tpu_custom_call.1} parent=1 // pred_check
      _
    $region39: #{tpu_custom_call.1} parent=1 // pred_check_branch
      %77 = sbr.rel (0) target = $region41
    $region40: #{tpu_custom_call.1} parent=1 // pred_region
      %78 = dma.done [#allocation6], 512
    $region41: #{tpu_custom_call.1} parent=1 // pred_fallthru
      _
    // Predicated region
    $region42: #{tpu_custom_call.1} parent=1 // pred_check
      _
    $region43: #{tpu_custom_call.1} parent=1 // pred_check_branch
      %80 = sbr.rel (0) target = $region45
    $region44: #{tpu_custom_call.1} parent=1 // pred_region
      %81 = dma.done [#allocation9], 512
    $region45: #{tpu_custom_call.1} parent=1 // pred_fallthru
      _
    %v82 = vld [vmem:[#allocation2] sm:$0xff]
    %v83 = vld [vmem:[#allocation2 + $0x8] sm:$0xff]
    %v84 = vld [vmem:[#allocation5] sm:$0xff]
    %v85 = vld [vmem:[#allocation5 + $0x8] sm:$0xff]
    %v86 = vld [vmem:[#allocation5 + $0x10] sm:$0xff]
    %v87 = vld [vmem:[#allocation5 + $0x18] sm:$0xff]
    %v88 = vld [vmem:[%s2] sm:$0x1]
    %v90 = vlaneseq
    %v91 = vshrl.u32 %v90, 7
    %v92 = vsub.s32 0, %v91
    %v93 = vrot.slane %v88, %v92
    %vm95 = vcmask 261120
    %v97 = vsel %vm95, %v82, 0
    %v100 = vsel %vm95, %v83, 0
    %102 = vmatprep.subr.mxu0 0.0
    %103 = vmatpush1.msra.mxu0 %v84
    %104 = vmatprep.subr.mxu0 0.0
    %105 = vmatpush1.msra.mxu0 %v85
    %106 = vmatprep.subr.mxu0 0.0
    %107 = vmatpush1.msra.mxu0 %v86
    %108 = vmatprep.subr.mxu0 0.0
    %109 = vmatpush1.msra.mxu0 %v87
    %110 = vmatprep.subr.mxu0 0.0
    %111 = vmatpush1.msra.mxu0 0.0
    %112 = vmatprep.subr.mxu0 0.0
    %113 = vmatpush1.msra.mxu0 0.0
    %114 = vmatprep.subr.mxu0 0.0
    %115 = vmatpush1.msra.mxu0 0.0
    %116 = vmatprep.subr.mxu0 0.0
    %117 = vmatpush1.msra.mxu0 0.0
    %118 = vmatprep.subr.mxu0 0.0
    %119 = vmatpush1.msra.mxu0 0.0
    %120 = vmatprep.subr.mxu0 0.0
    %121 = vmatpush1.msra.mxu0 0.0
    %122 = vmatprep.subr.mxu0 0.0
    %123 = vmatpush1.msra.mxu0 0.0
    %124 = vmatprep.subr.mxu0 0.0
    %125 = vmatpush1.msra.mxu0 0.0
    %126 = vmatprep.subr.mxu0 0.0
    %127 = vmatpush1.msra.mxu0 0.0
    %128 = vmatprep.subr.mxu0 0.0
    %129 = vmatpush1.msra.mxu0 0.0
    %130 = vmatprep.subr.mxu0 0.0
    %131 = vmatpush1.msra.mxu0 0.0
    %132 = vmatprep.subr.mxu0 0.0
    %133 = vmatpush1.msra.mxu0 0.0
    %134 = vmatprep.subr.mxu0 0.0
    %135 = vmatpush1.msra.mxu0 0.0
    %136 = vmatprep.subr.mxu0 0.0
    %137 = vmatpush1.msra.mxu0 0.0
    %138 = vmatprep.subr.mxu0 0.0
    %139 = vmatpush1.msra.mxu0 0.0
    %140 = vmatprep.subr.mxu0 0.0
    %141 = vmatpush1.msra.mxu0 0.0
    %142 = vmatprep.subr.mxu0 0.0
    %143 = vmatpush1.msra.mxu0 0.0
    %144 = vmatprep.subr.mxu0 0.0
    %145 = vmatpush1.msra.mxu0 0.0
    %146 = vmatprep.subr.mxu0 0.0
    %147 = vmatpush1.msra.mxu0 0.0
    %148 = vmatprep.subr.mxu0 0.0
    %149 = vmatpush1.msra.mxu0 0.0
    %150 = vmatprep.subr.mxu0 0.0
    %151 = vmatpush1.msra.mxu0 0.0
    %152 = vmatprep.subr.mxu0 0.0
    %153 = vmatpush1.msra.mxu0 0.0
    %154 = vmatprep.subr.mxu0 0.0
    %155 = vmatpush1.msra.mxu0 0.0
    %156 = vmatprep.subr.mxu0 0.0
    %157 = vmatpush1.msra.mxu0 0.0
    %158 = vmatprep.subr.mxu0 0.0
    %159 = vmatpush1.msra.mxu0 0.0
    %160 = vmatprep.subr.mxu0 0.0
    %161 = vmatpush1.msra.mxu0 0.0
    %162 = vmatprep.subr.mxu0 0.0
    %163 = vmatpush1.msra.mxu0 0.0
    %164 = vmatprep.subr.mxu0 0.0
    %165 = vmatpush1.msra.mxu0 0.0
    %166 = vmatprep.mubr.f32.mxu0 0.0
    %167 = vmatmul.mubr.f32.gmra.mrb[0].mxu0 %v97
    %v168 = vpop.f32.mrb[0].mxu0
    %v169 = vadd.f32 %v93, %v168
    %v170 = vpop.f32.mrb[0].mxu0
    %171 = vmatprep.mubr.f32.mxu0 0.0
    %172 = vmatmul.mubr.f32.gmra.mrb[0].mxu0 %v100
    %v173 = vpop.f32.mrb[0].mxu0
    %v174 = vadd.f32 %v93, %v173
    %v175 = vpop.f32.mrb[0].mxu0
    %176 = vdwg.mxu0
    %v177 = vmax.f32 %v169, 0.0
    %v178 = vmax.f32 %v174, 0.0
    %v179 = vld [vmem:[#allocation7] sm:$0xff]
    %v180 = vld [vmem:[#allocation7 + $0x8] sm:$0xff]
    %v181 = vld [vmem:[#allocation7 + $0x10] sm:$0xff]
    %v182 = vld [vmem:[#allocation7 + $0x18] sm:$0xff]
    %v183 = vld [vmem:[%s4] sm:$0x1]
    %v185 = vlaneseq
    %v186 = vshrl.u32 %v185, 7
    %v187 = vsub.s32 0, %v186
    %v188 = vrot.slane %v183, %v187
    %v191 = vsel %vm95, %v177, 0
    %v194 = vsel %vm95, %v178, 0
    %196 = vmatprep.subr.mxu0 0.0
    %197 = vmatpush1.msra.mxu0 %v179
    %198 = vmatprep.subr.mxu0 0.0
    %199 = vmatpush1.msra.mxu0 %v180
    %200 = vmatprep.subr.mxu0 0.0
    %201 = vmatpush1.msra.mxu0 %v181
    %202 = vmatprep.subr.mxu0 0.0
    %203 = vmatpush1.msra.mxu0 %v182
    %204 = vmatprep.subr.mxu0 0.0
    %205 = vmatpush1.msra.mxu0 0.0
    %206 = vmatprep.subr.mxu0 0.0
    %207 = vmatpush1.msra.mxu0 0.0
    %208 = vmatprep.subr.mxu0 0.0
    %209 = vmatpush1.msra.mxu0 0.0
    %210 = vmatprep.subr.mxu0 0.0
    %211 = vmatpush1.msra.mxu0 0.0
    %212 = vmatprep.subr.mxu0 0.0
    %213 = vmatpush1.msra.mxu0 0.0
    %214 = vmatprep.subr.mxu0 0.0
    %215 = vmatpush1.msra.mxu0 0.0
    %216 = vmatprep.subr.mxu0 0.0
    %217 = vmatpush1.msra.mxu0 0.0
    %218 = vmatprep.subr.mxu0 0.0
    %219 = vmatpush1.msra.mxu0 0.0
    %220 = vmatprep.subr.mxu0 0.0
    %221 = vmatpush1.msra.mxu0 0.0
    %222 = vmatprep.subr.mxu0 0.0
    %223 = vmatpush1.msra.mxu0 0.0
    %224 = vmatprep.subr.mxu0 0.0
    %225 = vmatpush1.msra.mxu0 0.0
    %226 = vmatprep.subr.mxu0 0.0
    %227 = vmatpush1.msra.mxu0 0.0
    %228 = vmatprep.subr.mxu0 0.0
    %229 = vmatpush1.msra.mxu0 0.0
    %230 = vmatprep.subr.mxu0 0.0
    %231 = vmatpush1.msra.mxu0 0.0
    %232 = vmatprep.subr.mxu0 0.0
    %233 = vmatpush1.msra.mxu0 0.0
    %234 = vmatprep.subr.mxu0 0.0
    %235 = vmatpush1.msra.mxu0 0.0
    %236 = vmatprep.subr.mxu0 0.0
    %237 = vmatpush1.msra.mxu0 0.0
    %238 = vmatprep.subr.mxu0 0.0
    %239 = vmatpush1.msra.mxu0 0.0
    %240 = vmatprep.subr.mxu0 0.0
    %241 = vmatpush1.msra.mxu0 0.0
    %242 = vmatprep.subr.mxu0 0.0
    %243 = vmatpush1.msra.mxu0 0.0
    %244 = vmatprep.subr.mxu0 0.0
    %245 = vmatpush1.msra.mxu0 0.0
    %246 = vmatprep.subr.mxu0 0.0
    %247 = vmatpush1.msra.mxu0 0.0
    %248 = vmatprep.subr.mxu0 0.0
    %249 = vmatpush1.msra.mxu0 0.0
    %250 = vmatprep.subr.mxu0 0.0
    %251 = vmatpush1.msra.mxu0 0.0
    %252 = vmatprep.subr.mxu0 0.0
    %253 = vmatpush1.msra.mxu0 0.0
    %254 = vmatprep.subr.mxu0 0.0
    %255 = vmatpush1.msra.mxu0 0.0
    %256 = vmatprep.subr.mxu0 0.0
    %257 = vmatpush1.msra.mxu0 0.0
    %258 = vmatprep.subr.mxu0 0.0
    %259 = vmatpush1.msra.mxu0 0.0
    %260 = vmatprep.mubr.f32.mxu0 0.0
    %261 = vmatmul.mubr.f32.gmra.mrb[0].mxu0 %v191
    %v262 = vpop.f32.mrb[0].mxu0
    %v263 = vadd.f32 %v188, %v262
    %v264 = vpop.f32.mrb[0].mxu0
    %265 = vmatprep.mubr.f32.mxu0 0.0
    %266 = vmatmul.mubr.f32.gmra.mrb[0].mxu0 %v194
    %v267 = vpop.f32.mrb[0].mxu0
    %v268 = vadd.f32 %v188, %v267
    %v269 = vpop.f32.mrb[0].mxu0
    %270 = vdwg.mxu0
    %v271 = vmax.f32 %v263, 0.0
    %v272 = vmax.f32 %v268, 0.0
    %v273 = vld [vmem:[#allocation8] sm:$0xff]
    %v274 = vld [vmem:[#allocation8 + $0x8] sm:$0xff]
    %v275 = vld [vmem:[#allocation8 + $0x10] sm:$0xff]
    %v276 = vld [vmem:[#allocation8 + $0x18] sm:$0xff]
    %v277 = vld [vmem:[%s6] sm:$0x1]
    %v279 = vlaneseq
    %v280 = vshrl.u32 %v279, 7
    %v281 = vsub.s32 0, %v280
    %v282 = vrot.slane %v277, %v281
    %v285 = vsel %vm95, %v271, 0
    %v288 = vsel %vm95, %v272, 0
    %290 = vmatprep.subr.mxu0 0.0
    %291 = vmatpush1.msra.mxu0 %v273
    %292 = vmatprep.subr.mxu0 0.0
    %293 = vmatpush1.msra.mxu0 %v274
    %294 = vmatprep.subr.mxu0 0.0
    %295 = vmatpush1.msra.mxu0 %v275
    %296 = vmatprep.subr.mxu0 0.0
    %297 = vmatpush1.msra.mxu0 %v276
    %298 = vmatprep.subr.mxu0 0.0
    %299 = vmatpush1.msra.mxu0 0.0
    %300 = vmatprep.subr.mxu0 0.0
    %301 = vmatpush1.msra.mxu0 0.0
    %302 = vmatprep.subr.mxu0 0.0
    %303 = vmatpush1.msra.mxu0 0.0
    %304 = vmatprep.subr.mxu0 0.0
    %305 = vmatpush1.msra.mxu0 0.0
    %306 = vmatprep.subr.mxu0 0.0
    %307 = vmatpush1.msra.mxu0 0.0
    %308 = vmatprep.subr.mxu0 0.0
    %309 = vmatpush1.msra.mxu0 0.0
    %310 = vmatprep.subr.mxu0 0.0
    %311 = vmatpush1.msra.mxu0 0.0
    %312 = vmatprep.subr.mxu0 0.0
    %313 = vmatpush1.msra.mxu0 0.0
    %314 = vmatprep.subr.mxu0 0.0
    %315 = vmatpush1.msra.mxu0 0.0
    %316 = vmatprep.subr.mxu0 0.0
    %317 = vmatpush1.msra.mxu0 0.0
    %318 = vmatprep.subr.mxu0 0.0
    %319 = vmatpush1.msra.mxu0 0.0
    %320 = vmatprep.subr.mxu0 0.0
    %321 = vmatpush1.msra.mxu0 0.0
    %322 = vmatprep.subr.mxu0 0.0
    %323 = vmatpush1.msra.mxu0 0.0
    %324 = vmatprep.subr.mxu0 0.0
    %325 = vmatpush1.msra.mxu0 0.0
    %326 = vmatprep.subr.mxu0 0.0
    %327 = vmatpush1.msra.mxu0 0.0
    %328 = vmatprep.subr.mxu0 0.0
    %329 = vmatpush1.msra.mxu0 0.0
    %330 = vmatprep.subr.mxu0 0.0
    %331 = vmatpush1.msra.mxu0 0.0
    %332 = vmatprep.subr.mxu0 0.0
    %333 = vmatpush1.msra.mxu0 0.0
    %334 = vmatprep.subr.mxu0 0.0
    %335 = vmatpush1.msra.mxu0 0.0
    %336 = vmatprep.subr.mxu0 0.0
    %337 = vmatpush1.msra.mxu0 0.0
    %338 = vmatprep.subr.mxu0 0.0
    %339 = vmatpush1.msra.mxu0 0.0
    %340 = vmatprep.subr.mxu0 0.0
    %341 = vmatpush1.msra.mxu0 0.0
    %342 = vmatprep.subr.mxu0 0.0
    %343 = vmatpush1.msra.mxu0 0.0
    %344 = vmatprep.subr.mxu0 0.0
    %345 = vmatpush1.msra.mxu0 0.0
    %346 = vmatprep.subr.mxu0 0.0
    %347 = vmatpush1.msra.mxu0 0.0
    %348 = vmatprep.subr.mxu0 0.0
    %349 = vmatpush1.msra.mxu0 0.0
    %350 = vmatprep.subr.mxu0 0.0
    %351 = vmatpush1.msra.mxu0 0.0
    %352 = vmatprep.subr.mxu0 0.0
    %353 = vmatpush1.msra.mxu0 0.0
    %354 = vmatprep.mubr.f32.mxu0 0.0
    %355 = vmatmul.mubr.f32.gmra.mrb[0].mxu0 %v285
    %v356 = vpop.f32.mrb[0].mxu0
    %v357 = vadd.f32 %v282, %v356
    %v358 = vpop.f32.mrb[0].mxu0
    %359 = vmatprep.mubr.f32.mxu0 0.0
    %360 = vmatmul.mubr.f32.gmra.mrb[0].mxu0 %v288
    %v361 = vpop.f32.mrb[0].mxu0
    %v362 = vadd.f32 %v282, %v361
    %v363 = vpop.f32.mrb[0].mxu0
    %364 = vdwg.mxu0
    %365 = vst [vmem:[#allocation10] sm:$0xff] %v357
    %366 = vst [vmem:[#allocation10 + $0x8] sm:$0xff] %v362
    // Predicated region
    $region46: #{tpu_custom_call.1} parent=1 // pred_check
      _
    $region47: #{tpu_custom_call.1} parent=1 // pred_check_branch
      %368 = sbr.rel (0) target = $region49
    $region48: #{tpu_custom_call.1} parent=1 // pred_region
      %s370 = ssub.s32 256, 256
      %371 = vsyncadd [#allocation4], %s370
      %s372 = sshll.u32 [#allocation10], 4
      %s373 = int_to_ptr.vmem [resolvable:$true] %s372
      %378 = dma.vmem_to_hbm [thread:$0]  %s373, 256, %s7, [#allocation4], 128, 128, 8
    $region49: #{tpu_custom_call.1} parent=1 // pred_fallthru
      _
    // Predicated region
    $region50: #{tpu_custom_call.1} parent=1 // pred_check
      _
    $region51: #{tpu_custom_call.1} parent=1 // pred_check_branch
      %380 = sbr.rel (0) target = $region53
    $region52: #{tpu_custom_call.1} parent=1 // pred_region
      %381 = dma.done [#allocation4], 256
    $region53: #{tpu_custom_call.1} parent=1 // pred_fallthru
      _
    %382 = vsyncpa [#allocation3], 1
    %383 = vsyncpa [#allocation6], 1
    %384 = vsyncpa [#allocation9], 1
    %385 = vsyncpa [#allocation4], 1

</llo_original>
